<compile_context>
chip_gen: v7x
topology: tpu7x:2x2x1
jax: 0.10.0
libtpu: 0.0.40
codegen_flags: <defaults>
</compile_context>

<pallas_src>
import jax
import jax.numpy as jnp
from jax.experimental import pallas as pl
from jax.experimental.pallas import tpu as pltpu


def _weighted_prompt_kernel(w_ref, x_ref, o_ref):
    # w_ref: SMEM (N,) float32 scalar-prefetch weights
    # x_ref: VMEM (N, tm, td) block of stacked embeddings
    # o_ref: VMEM (tm, td) output block
    n = x_ref.shape[0]
    acc = w_ref[0] * x_ref[0].astype(jnp.float32)
    for i in range(1, n):  # N is tiny & static -> fully unrolled VPU axpy chain
        acc = acc + w_ref[i] * x_ref[i].astype(jnp.float32)
    o_ref[...] = acc.astype(o_ref.dtype)


def weighted_prompt(weight, graph_embedding):
    """weight: (1, N) f32; graph_embedding: (N, M, D) -> (M, D)."""
    n, m, d = graph_embedding.shape
    assert weight.shape == (1, n), "length must equal"
    w = weight.reshape(n).astype(jnp.float32)

    x_dt = graph_embedding.dtype
    in_bytes = jnp.dtype(x_dt).itemsize
    out_bytes = in_bytes

    LANE = 128
    sub = max(8, 32 // in_bytes)  # sublane grain: 8 (f32), 16 (bf16), 32 (int8)

    # ---- generation-aware tile selection (v7x: 64 MiB VMEM, v5e/v6e: 128 MiB) ----
    try:
        vmem_cap = int(pltpu.get_tpu_info().vmem_capacity_bytes)
    except Exception:  # conservative fallback (v7x per-TC)
        vmem_cap = 64 << 20
    budget = vmem_cap // 3  # double-buffered in/out blocks + temps must fit w/ headroom

    # M tile: full (sublane-padded) M when modest, else fixed 1024-row chunks.
    TM_CAP = 1024
    if m <= TM_CAP:
        tm = pl.cdiv(m, sub) * sub
    else:
        tm = TM_CAP
    m_pad = pl.cdiv(m, tm) * tm

    # D tile: largest multiple of 128 that divides padded D and fits the budget.
    d_pad = pl.cdiv(d, LANE) * LANE
    u = d_pad // LANE
    # bytes per 128-lane column of one grid step (double-buffered N inputs + output)
    per_lane_col = 2 * tm * (n * in_bytes + out_bytes)
    td_budget_u = max(1, min(u, budget // (per_lane_col * LANE)))
    v = 1
    for cand in range(int(td_budget_u), 0, -1):
        if u % cand == 0:
            v = cand
            break
    # Keep >= 2 parallel grid steps so v7x's 2nd TensorCore is used (no-op on v5e/v6e).
    if (m_pad // tm) * (u // v) == 1 and u > 1:
        for cand in range(v - 1, 0, -1):
            if u % cand == 0:
                v = cand
                break
    td = v * LANE
    grid = (m_pad // tm, d_pad // td)

    # Zero-pad ragged M/D up to the tile grain (sliced back off below).
    x = graph_embedding
    if (m_pad, d_pad) != (m, d):
        x = jnp.pad(x, ((0, 0), (0, m_pad - m), (0, d_pad - d)))

    # Raise the scoped VMEM limit to cover the enlarged, double-buffered tiles.
    tile_bytes = tm * td * (n * in_bytes + out_bytes)
    vmem_limit = int(min(0.9 * vmem_cap, max(32 << 20, 4 * tile_bytes + (16 << 20))))

    out = pl.pallas_call(
        _weighted_prompt_kernel,
        out_shape=jax.ShapeDtypeStruct((m_pad, d_pad), x_dt),
        grid_spec=pltpu.PrefetchScalarGridSpec(
            num_scalar_prefetch=1,  # (N,) f32 weights -> SMEM, loaded once
            grid=grid,
            in_specs=[
                pl.BlockSpec((n, tm, td), lambda i, j, w: (0, i, j)),
            ],
            out_specs=pl.BlockSpec((tm, td), lambda i, j, w: (i, j)),
        ),
        compiler_params=pltpu.CompilerParams(
            dimension_semantics=("parallel", "parallel"),
            vmem_limit_bytes=vmem_limit,
        ),
    )(w, x)

    if (m_pad, d_pad) != (m, d):
        out = out[:m, :d]
    return out


if __name__ == "__main__":
    key = jax.random.PRNGKey(0)
    k_w, k_x = jax.random.split(key)

    weightednum = 4   # N: number of stacked prompt embeddings
    m, d = 8, 256     # each graph_embedding[i] has shape (M, D)

    # reset_parameters(): weight.data.uniform_(0, 1)
    weight = jax.random.uniform(k_w, (1, weightednum), dtype=jnp.float32,
                                minval=0.0, maxval=1.0)
    graph_embedding = jax.random.normal(k_x, (weightednum, m, d),
                                        dtype=jnp.float32)

    out = jax.block_until_ready(weighted_prompt(weight, graph_embedding))
    ref = jnp.einsum("n,nmd->md", weight[0], graph_embedding)
    assert out.shape == (m, d)
    assert jnp.allclose(out, ref, atol=1e-5, rtol=1e-5)

    # Ragged + bf16 storage path: exercises sublane/lane padding and f32 accumulate.
    m2, d2 = 5, 200
    ge_bf16 = jax.random.normal(k_x, (weightednum, m2, d2),
                                dtype=jnp.float32).astype(jnp.bfloat16)
    out2 = jax.block_until_ready(weighted_prompt(weight, ge_bf16))
    ref2 = jnp.einsum("n,nmd->md", weight[0], ge_bf16.astype(jnp.float32))
    assert out2.shape == (m2, d2)
    assert jnp.allclose(out2.astype(jnp.float32), ref2, atol=5e-2, rtol=5e-2)

    print("KERNEL_OK")
</pallas_src>

<mosaic_0001>
module attributes {stable_mosaic.version = 11 : i64} {
  func.func @_weighted_prompt_kernel(%arg0: i32, %arg1: i32, %arg2: memref<4xf32, #tpu.memory_space<smem>>, %arg3: memref<4x8x128xf32, #tpu.memory_space<vmem>>, %arg4: memref<8x128xf32, #tpu.memory_space<vmem>>) attributes {dimension_semantics = [#tpu.dimension_semantics<parallel>, #tpu.dimension_semantics<parallel>], iteration_bounds = array<i64: 1, 2>, scalar_prefetch = 1 : i64, scratch_operands = 0 : i64, tpu.core_type = #tpu.core_type<tc>, window_params = [{transform_indices = @transform_0, window_bounds = array<i64: 4, 8, 128>}, {transform_indices = @transform_1, window_bounds = array<i64: 8, 128>}]} {
    %c0 = arith.constant 0 : index
    %0 = memref.load %arg2[%c0] : memref<4xf32, #tpu.memory_space<smem>>
    %c0_0 = arith.constant 0 : index
    %c0_1 = arith.constant 0 : index
    %c0_2 = arith.constant 0 : index
    %1 = vector.load %arg3[%c0_0, %c0_1, %c0_2] : memref<4x8x128xf32, #tpu.memory_space<vmem>>, vector<1x8x128xf32>
    %2 = vector.shape_cast %1 : vector<1x8x128xf32> to vector<8x128xf32>
    %3 = vector.broadcast %0 : f32 to vector<8x128xf32>
    %4 = arith.mulf %3, %2 : vector<8x128xf32>
    %c1 = arith.constant 1 : index
    %5 = memref.load %arg2[%c1] : memref<4xf32, #tpu.memory_space<smem>>
    %c1_3 = arith.constant 1 : index
    %c0_4 = arith.constant 0 : index
    %c0_5 = arith.constant 0 : index
    %6 = vector.load %arg3[%c1_3, %c0_4, %c0_5] : memref<4x8x128xf32, #tpu.memory_space<vmem>>, vector<1x8x128xf32>
    %7 = vector.shape_cast %6 : vector<1x8x128xf32> to vector<8x128xf32>
    %8 = vector.broadcast %5 : f32 to vector<8x128xf32>
    %9 = arith.mulf %8, %7 : vector<8x128xf32>
    %10 = arith.addf %4, %9 : vector<8x128xf32>
    %c2 = arith.constant 2 : index
    %11 = memref.load %arg2[%c2] : memref<4xf32, #tpu.memory_space<smem>>
    %c2_6 = arith.constant 2 : index
    %c0_7 = arith.constant 0 : index
    %c0_8 = arith.constant 0 : index
    %12 = vector.load %arg3[%c2_6, %c0_7, %c0_8] : memref<4x8x128xf32, #tpu.memory_space<vmem>>, vector<1x8x128xf32>
    %13 = vector.shape_cast %12 : vector<1x8x128xf32> to vector<8x128xf32>
    %14 = vector.broadcast %11 : f32 to vector<8x128xf32>
    %15 = arith.mulf %14, %13 : vector<8x128xf32>
    %16 = arith.addf %10, %15 : vector<8x128xf32>
    %c3 = arith.constant 3 : index
    %17 = memref.load %arg2[%c3] : memref<4xf32, #tpu.memory_space<smem>>
    %c3_9 = arith.constant 3 : index
    %c0_10 = arith.constant 0 : index
    %c0_11 = arith.constant 0 : index
    %18 = vector.load %arg3[%c3_9, %c0_10, %c0_11] : memref<4x8x128xf32, #tpu.memory_space<vmem>>, vector<1x8x128xf32>
    %19 = vector.shape_cast %18 : vector<1x8x128xf32> to vector<8x128xf32>
    %20 = vector.broadcast %17 : f32 to vector<8x128xf32>
    %21 = arith.mulf %20, %19 : vector<8x128xf32>
    %22 = arith.addf %16, %21 : vector<8x128xf32>
    %c0_12 = arith.constant 0 : index
    %c0_13 = arith.constant 0 : index
    %23 = vector.load %arg4[%c0_12, %c0_13] : memref<8x128xf32, #tpu.memory_space<vmem>>, vector<8x128xf32>
    tpu.vector_store %arg4[%c0_12, %c0_13], %22 {strides = array<i32>} : memref<8x128xf32, #tpu.memory_space<vmem>>, vector<8x128xf32>,
    return
  }
  func.func @transform_0(%arg0: i32, %arg1: i32, %arg2: memref<4xf32, #tpu.memory_space<smem>>) -> (i32, i32, i32) {
    %c0_i32 = arith.constant 0 : i32
    %c0_i32_0 = arith.constant 0 : i32
    return %c0_i32, %arg0, %arg1 : i32, i32, i32
  }
  func.func @transform_1(%arg0: i32, %arg1: i32, %arg2: memref<4xf32, #tpu.memory_space<smem>>) -> (i32, i32) {
    %c0_i32 = arith.constant 0 : i32
    return %arg0, %arg1 : i32, i32
  }
}

</mosaic_0001>

<llo_original>
// kernel: tpu_custom_call.1
$region0: #{tpu_custom_call.1}
  #allocation0 [shape = 'u32[]', space=smem, size = 0x4, offset = 0x4, fixed_abs, tag = 'smem constant byte address 0x4 - core index']
  #allocation1 [shape = 'u32[144,128]{1,0:T(1,128)}', space=vmem, size = 0x12000, scoped, tag = 'internal scratch']
  #allocation2 [shape = 's32[1]{0}', space=sflag, size = 0x4, scoped, tag = 'scoped memory for tpu_custom_call.1']
  #allocation3 [shape = 'u8[512]{0}', space=smem, size = 0x200, scoped, tag = 'prefetched SMEM operand 0']
  %s0 = inlined_call_operand.hbm [shape: f32[4], index: 0, kind: input, shape index: {}]
  %s1 = inlined_call_operand.hbm [shape: f32[4,8,256], index: 1, kind: input, shape index: {}]
  %s2 = inlined_call_operand.hbm [shape: f32[8,256], index: 2, kind: output, shape index: {}]
  %s3 = sld [smem:[#allocation0]]
  $region41: #{tpu_custom_call.1} parent=0
    _
  %s5 = ssub.s32 1, %s3
  %s6 = scalar_select 0, %s5, %s3
  %8 = dma.hbm_to_smem %s0, 16, [#allocation3], [#allocation2]
  %9 = dma.done [#allocation2], 16
  %10 = sfence
  $region1: #{tpu_custom_call.1} parent=0
    #allocation4 [shape = 'u8[32768]{0}', space=vmem, size = 0x8000, scoped, tag = 'input window, operand 1']
    #allocation5 [shape = 's32[2]{0}', space=sflag, size = 0x8, scoped, tag = 'scoped memory for tpu_custom_call.1']
    #allocation6 [shape = 's32[2]{0}', space=sflag, size = 0x8, scoped, tag = 'scoped memory for tpu_custom_call.1']
    #allocation7 [shape = 'u8[8192]{0}', space=vmem, size = 0x2000, scoped, tag = 'output window, operand 0']
    %11 = vsyncpa [#allocation5], 0
    %s12 = scalar_lea.sflag [#allocation5], 1
    %13 = vsyncpa %s12, 0
    %14 = vsyncpa [#allocation6], 0
    %s15 = scalar_lea.sflag [#allocation6], 1
    %16 = vsyncpa %s15, 0
    loop: start=0, step=1, limit=4
    $region2: #{tpu_custom_call.1} parent=1 // loop_pre_header
      _
    $region3: #{tpu_custom_call.1} parent=1 // loop_header
      %s18 = sphi 0, %s22
      %p19 = scmp.ge.s32.totalorder %s18, 4
      %s25 = sphi 0, %s37
      %s26 = sphi 0, %s33
      %s27 = sphi 0, %s25
      %s28 = sphi 0, %s26
      %s29 = sphi 0, %s27
      %s30 = sphi 0, %s28
      %s42 = sphi 0, %s44
      %s45 = sphi 0, %s42
      %s46 = sphi 0, %s45
      %s62 = sphi 0, %s46
      %s70 = sphi 0, %s72
      %s73 = sphi 0, %s70
      %s74 = sphi 0, %s73
      %s90 = sphi 0, %s74
    $region4: #{tpu_custom_call.1} parent=1 // loop_header_branch
      %21 = sbr.rel (%p19) target = $region8
    $region5: #{tpu_custom_call.1} parent=1 // loop_body
      %s23 = ssub.s32 %s18, 1
      %s24 = ssub.s32 %s18, 2
      %s31 = sadd.s32 1, %s26
      %p32 = scmp.ge.s32.totalorder %s31, 2
      %s33 = scalar_select %p32, 0, %s31
      %s34 = sadd.s32 1, %s25
      %s35 = scalar_select %p32, %s34, %s25
      %p36 = scmp.ge.s32.totalorder %s35, 1
      %s37 = scalar_select %p36, 0, %s35
      %s38 = ssub.s32 %s25, %s37
      %s39 = ssub.s32 %s26, %s33
      %s40 = sor.u32 %s38, %s39
      %p41 = scmp.eq.s32.totalorder %s40, 0
      %s43 = sadd.s32 %s42, 1
      %s44 = scalar_select %p41, %s42, %s43
      %p47 = pneg %p41
      %p48 = scmp.eq.s32.totalorder %s18, 1
      %p49 = por %p47, %p48
      %p50 = scmp.ne.s32.totalorder %s42, %s45
      %p51 = scmp.eq.s32.totalorder %s18, 0
      %p52 = por %p50, %p51
      %p53 = scmp.ne.s32.totalorder %s42, %s45
      %p54 = scmp.eq.s32.totalorder %s23, 1
      %p55 = por %p53, %p54
      %p56 = scmp.ne.s32.totalorder %s45, %s46
      %p57 = scmp.eq.s32.totalorder %s23, 0
      %p58 = por %p56, %p57
      %p59 = scmp.ne.s32.totalorder %s45, %s46
      %p60 = scmp.eq.s32.totalorder %s24, 1
      %p61 = por %p59, %p60
      %p63 = scmp.ne.s32.totalorder %s46, %s62
      %p64 = scmp.eq.s32.totalorder %s24, 0
      %p65 = por %p63, %p64
      %s66 = ssub.s32 %s25, %s37
      %s67 = ssub.s32 %s26, %s33
      %s68 = sor.u32 %s66, %s67
      %p69 = scmp.eq.s32.totalorder %s68, 0
      %s71 = sadd.s32 %s70, 1
      %s72 = scalar_select %p69, %s70, %s71
      %p75 = pneg %p69
      %p76 = scmp.eq.s32.totalorder %s18, 1
      %p77 = por %p75, %p76
      %p78 = scmp.ne.s32.totalorder %s70, %s73
      %p79 = scmp.eq.s32.totalorder %s18, 0
      %p80 = por %p78, %p79
      %p81 = scmp.ne.s32.totalorder %s70, %s73
      %p82 = scmp.eq.s32.totalorder %s23, 1
      %p83 = por %p81, %p82
      %p84 = scmp.ne.s32.totalorder %s73, %s74
      %p85 = scmp.eq.s32.totalorder %s23, 0
      %p86 = por %p84, %p85
      %p87 = scmp.ne.s32.totalorder %s73, %s74
      %p88 = scmp.eq.s32.totalorder %s24, 1
      %p89 = por %p87, %p88
      %p91 = scmp.ne.s32.totalorder %s74, %s90
      %p92 = scmp.eq.s32.totalorder %s24, 0
      %p93 = por %p91, %p92
      %p94 = scmp.le.s32.totalorder 1, %s18
      %p95 = scmp.lt.s32.totalorder %s18, 3
      %p96 = pnand %p94, %p95
      %p97 = pneg %p96
      // Predicated region
      $region9: #{tpu_custom_call.1} parent=5 // pred_check
        _
      $region10: #{tpu_custom_call.1} parent=5 // pred_check_branch
        %99 = sbr.rel (%p96) target = $region12
      $region11: #{tpu_custom_call.1} parent=5 // pred_region
        %s100 = ssub.s32 %s18, 1
      $region12: #{tpu_custom_call.1} parent=5 // pred_fallthru
        _
      %p101 = scmp.lt.s32.totalorder %s18, 2
      // Predicated region
      $region13: #{tpu_custom_call.1} parent=5 // pred_check
        %p102 = pneg %p101
      $region14: #{tpu_custom_call.1} parent=5 // pred_check_branch
        %104 = sbr.rel (%p102) target = $region16
      $region15: #{tpu_custom_call.1} parent=5 // pred_region
        // Predicated region
        $region17: #{tpu_custom_call.1} parent=15 // pred_check
          %p105 = pneg %p52
        $region18: #{tpu_custom_call.1} parent=15 // pred_check_branch
          %107 = sbr.rel (%p105) target = $region20
        $region19: #{tpu_custom_call.1} parent=15 // pred_region
          %s108 = sand.u32 %s42, 1
          %s109 = scalar_lea.sflag [#allocation5], %s108
          %s110 = sand.u32 %s42, 1
          %s111 = smul.addr %s110, 32
          %s112 = scalar_lea.vmem [#allocation4], %s111
          %s114 = ssub.s32 512, 512
          %115 = vsyncadd %s109, %s114
          %s116 = smul.addr %s25, 2
          %s117 = sadd.s32 %s26, %s116
          %s118 = smul.addr %s117, 128
          %s119 = scalar_lea.hbm %s1, %s118
          %s120 = sshll.u32 %s112, 4
          %s121 = int_to_ptr.vmem [resolvable:$true] %s120
          %126 = dma.hbm_to_vmem [thread:$0]  %s119, 512, %s121, %s109, 256, 128, 8
        $region20: #{tpu_custom_call.1} parent=15 // pred_fallthru
          _
      $region16: #{tpu_custom_call.1} parent=5 // pred_fallthru
        _
      %p127 = scmp.le.s32.totalorder 1, %s18
      %p128 = scmp.lt.s32.totalorder %s18, 3
      %p129 = pnand %p127, %p128
      %p130 = pneg %p129
      // Predicated region
      $region21: #{tpu_custom_call.1} parent=5 // pred_check
        _
      $region22: #{tpu_custom_call.1} parent=5 // pred_check_branch
        %132 = sbr.rel (%p129) target = $region24
      $region23: #{tpu_custom_call.1} parent=5 // pred_region
        %s133 = ssub.s32 %s18, 1
        %s134 = sand.u32 %s45, 1
        %s135 = scalar_lea.sflag [#allocation5], %s134
        %s136 = sand.u32 %s45, 1
        %s137 = smul.addr %s136, 32
        %s138 = scalar_lea.vmem [#allocation4], %s137
        // Predicated region
        $region25: #{tpu_custom_call.1} parent=23 // pred_check
          %p139 = pneg %p58
        $region26: #{tpu_custom_call.1} parent=23 // pred_check_branch
          %141 = sbr.rel (%p139) target = $region28
        $region27: #{tpu_custom_call.1} parent=23 // pred_region
          %142 = dma.done %s135, 512
        $region28: #{tpu_custom_call.1} parent=23 // pred_fallthru
          _
        %s143 = sand.u32 %s45, 1
        %s144 = scalar_lea.sflag [#allocation5], %s143
        %s145 = sand.u32 %s45, 1
        %s146 = smul.addr %s145, 32
        %s147 = scalar_lea.vmem [#allocation4], %s146
        %p148 = pneg %p58
        %p149 = pneg %p55
        %p150 = pneg %p86
        %p151 = pneg %p83
        %s152 = sand.u32 %s73, 1
        %s153 = scalar_lea.sflag [#allocation6], %s152
        %s154 = sand.u32 %s73, 1
        %s155 = smul.addr %s154, 8
        %s156 = scalar_lea.vmem [#allocation7], %s155
        %s157 = sld [smem:[#allocation3]]
        %v158 = vld [vmem:[%s138] sm:$0xff]
        %v159 = vstv %s157
        %v160 = vmul.f32 %v159, %v158
        %s161 = sld [smem:[#allocation3 + $0x1]]
        %s162 = scalar_lea.vmem %s138, 8 [#allocation4]
        %v163 = vld [vmem:[%s162] sm:$0xff]
        %v164 = vstv %s161
        %v165 = vmul.f32 %v164, %v163
        %v166 = vadd.f32 %v160, %v165
        %s167 = sld [smem:[#allocation3 + $0x2]]
        %s168 = scalar_lea.vmem %s138, 16 [#allocation4]
        %v169 = vld [vmem:[%s168] sm:$0xff]
        %v170 = vstv %s167
        %v171 = vmul.f32 %v170, %v169
        %v172 = vadd.f32 %v166, %v171
        %s173 = sld [smem:[#allocation3 + $0x3]]
        %s174 = scalar_lea.vmem %s138, 24 [#allocation4]
        %v175 = vld [vmem:[%s174] sm:$0xff]
        %v176 = vstv %s173
        %v177 = vmul.f32 %v176, %v175
        %v178 = vadd.f32 %v172, %v177
        %179 = vst [vmem:[%s156] sm:$0xff] %v178
        %s180 = sand.u32 %s73, 1
        %s181 = scalar_lea.sflag [#allocation6], %s180
        %s182 = sand.u32 %s73, 1
        %s183 = smul.addr %s182, 8
        %s184 = scalar_lea.vmem [#allocation7], %s183
        // Predicated region
        $region29: #{tpu_custom_call.1} parent=23 // pred_check
          %p185 = pneg %p83
        $region30: #{tpu_custom_call.1} parent=23 // pred_check_branch
          %187 = sbr.rel (%p185) target = $region32
        $region31: #{tpu_custom_call.1} parent=23 // pred_region
          %s189 = ssub.s32 128, 128
          %190 = vsyncadd %s181, %s189
          %s191 = smul.addr %s27, 2
          %s192 = sadd.s32 %s28, %s191
          %s193 = smul.addr %s192, 128
          %s194 = scalar_lea.hbm %s2, %s193
          %s196 = sshll.u32 %s184, 4
          %s197 = int_to_ptr.vmem [resolvable:$true] %s196
          %199 = dma.vmem_to_hbm [thread:$0]  %s197, 128, %s194, %s181
        $region32: #{tpu_custom_call.1} parent=23 // pred_fallthru
          _
      $region24: #{tpu_custom_call.1} parent=5 // pred_fallthru
        _
      %p200 = scmp.le.s32.totalorder 2, %s18
      // Predicated region
      $region33: #{tpu_custom_call.1} parent=5 // pred_check
        %p201 = pneg %p200
      $region34: #{tpu_custom_call.1} parent=5 // pred_check_branch
        %203 = sbr.rel (%p201) target = $region36
      $region35: #{tpu_custom_call.1} parent=5 // pred_region
        %s204 = ssub.s32 %s18, 2
        // Predicated region
        $region37: #{tpu_custom_call.1} parent=35 // pred_check
          %p205 = pneg %p89
        $region38: #{tpu_custom_call.1} parent=35 // pred_check_branch
          %207 = sbr.rel (%p205) target = $region40
        $region39: #{tpu_custom_call.1} parent=35 // pred_region
          %s208 = sand.u32 %s74, 1
          %s209 = scalar_lea.sflag [#allocation6], %s208
          %s210 = sand.u32 %s74, 1
          %s211 = smul.addr %s210, 8
          %s212 = scalar_lea.vmem [#allocation7], %s211
          %213 = dma.done %s209, 128
        $region40: #{tpu_custom_call.1} parent=35 // pred_fallthru
          _
      $region36: #{tpu_custom_call.1} parent=5 // pred_fallthru
        _
    $region6: #{tpu_custom_call.1} parent=1 // loop_footer
      %s22 = sadd.s32 1, %s18
    $region7: #{tpu_custom_call.1} parent=1 // loop_footer_branch
      %17 = sbr.rel target = $region3
    $region8: #{tpu_custom_call.1} parent=1 // loop_exit
      _
    %214 = vsyncpa [#allocation5], 1
    %s215 = scalar_lea.sflag [#allocation5], 1
    %216 = vsyncpa %s215, 1
    %217 = vsyncpa [#allocation6], 1
    %s218 = scalar_lea.sflag [#allocation6], 1
    %219 = vsyncpa %s218, 1

</llo_original>
